<compile_context>
chip_gen: v5e
topology: v5e:2x2
jax: 0.10.0
libtpu: 0.0.40
codegen_flags: <defaults>
</compile_context>

<pallas_src>
import jax
import jax.numpy as jnp
from jax import lax
from jax.experimental import pallas as pl
from jax.experimental.pallas import tpu as pltpu


def _constant_outputs_kernel(index_ref, sample_ref, zeros_ref):
    """Writes sample[i] = index and zeros[i, 0] = 0.0 for i in [0, b).

    All refs live in SMEM; this is pure scalar-core work (no VMEM, no VPU,
    no DMA of the feature map).
    """
    idx = index_ref[0]
    b = sample_ref.shape[0]  # static

    def body(i, carry):
        sample_ref[i] = idx
        zeros_ref[i, 0] = jnp.float32(0.0)
        return carry

    # Short, fixed trip-count loop over the batch; unrolled for the LLO
    # scheduler (b is small and static).
    lax.fori_loop(0, b, body, 0, unroll=True)


def constant_decoder_forward(x, index, sample=None, sample_max=False):
    """Pallas implementation of ConstantDecoder.forward.

    Returns (sample, 0.0, 0.0, x, zeros(b, 1)) matching the PyTorch module.
    `x` is returned as-is (no kernel copy); only the tiny constant outputs go
    through Pallas.
    """
    del sample_max  # unused, as in the reference module
    b = x.shape[0]

    # Runtime scalar input (SMEM) so changing `index` does not recompile.
    index_arr = jnp.asarray([index], dtype=jnp.int32)

    sample_default, zeros_out = pl.pallas_call(
        _constant_outputs_kernel,
        out_shape=(
            jax.ShapeDtypeStruct((b,), jnp.int32),      # sample (torch.full)
            jax.ShapeDtypeStruct((b, 1), jnp.float32),  # torch.zeros(b, 1)
        ),
        in_specs=[pl.BlockSpec(memory_space=pltpu.MemorySpace.SMEM)],
        out_specs=(
            pl.BlockSpec(memory_space=pltpu.MemorySpace.SMEM),
            pl.BlockSpec(memory_space=pltpu.MemorySpace.SMEM),
        ),
    )(index_arr)

    if sample is None:
        sample = sample_default

    # log_prob and entropy are literal Python floats 0.0 in the reference.
    # x is passed through untouched -- no HBM round-trip.
    return (sample, 0.0, 0.0, x, zeros_out)


if __name__ == "__main__":
    key = jax.random.PRNGKey(0)
    # Small shapes consistent with an NCHW feature map input.
    b, c, h, w = 2, 4, 16, 16
    x = jax.random.normal(key, (b, c, h, w), dtype=jnp.float32)

    index = 3  # the constant "action index" the decoder always emits

    sample, log_prob, entropy, x_out, zeros = constant_decoder_forward(x, index)
    jax.block_until_ready((sample, x_out, zeros))

    # Light correctness checks against the reference semantics.
    assert sample.shape == (b,) and bool(jnp.all(sample == index))
    assert log_prob == 0.0 and entropy == 0.0
    assert x_out.shape == x.shape and bool(jnp.allclose(x_out, x))
    assert zeros.shape == (b, 1) and bool(jnp.all(zeros == 0.0))

    # Also exercise the sample-provided path.
    provided = jnp.arange(b, dtype=jnp.int32)
    sample2, _, _, x_out2, zeros2 = constant_decoder_forward(x, index, sample=provided)
    jax.block_until_ready((sample2, x_out2, zeros2))
    assert bool(jnp.all(sample2 == provided))
    assert x_out2.shape == x.shape and bool(jnp.allclose(x_out2, x))

    print("KERNEL_OK")
</pallas_src>

<mosaic_0001>
module attributes {stable_mosaic.version = 11 : i64} {
  func.func @_constant_outputs_kernel(%arg0: memref<1xi32, #tpu.memory_space<smem>>, %arg1: memref<2xi32, #tpu.memory_space<smem>>, %arg2: memref<2x1xf32, #tpu.memory_space<smem>>) attributes {dimension_semantics = [], scalar_prefetch = 0 : i64, scratch_operands = 0 : i64, tpu.core_type = #tpu.core_type<tc>} {
    %c0 = arith.constant 0 : index
    %0 = memref.load %arg0[%c0] : memref<1xi32, #tpu.memory_space<smem>>
    %c0_i32 = arith.constant 0 : i32
    %1 = arith.index_cast %c0_i32 : i32 to index
    %2 = memref.load %arg1[%1] : memref<2xi32, #tpu.memory_space<smem>>
    memref.store %0, %arg1[%1] : memref<2xi32, #tpu.memory_space<smem>>
    %cst = arith.constant 0.000000e+00 : f32
    %3 = arith.index_cast %c0_i32 : i32 to index
    %c0_0 = arith.constant 0 : index
    %4 = memref.load %arg2[%3, %c0_0] : memref<2x1xf32, #tpu.memory_space<smem>>
    memref.store %cst, %arg2[%3, %c0_0] : memref<2x1xf32, #tpu.memory_space<smem>>
    %c1_i32 = arith.constant 1 : i32
    %5 = arith.index_cast %c1_i32 : i32 to index
    %6 = memref.load %arg1[%5] : memref<2xi32, #tpu.memory_space<smem>>
    memref.store %0, %arg1[%5] : memref<2xi32, #tpu.memory_space<smem>>
    %cst_1 = arith.constant 0.000000e+00 : f32
    %7 = arith.index_cast %c1_i32 : i32 to index
    %c0_2 = arith.constant 0 : index
    %8 = memref.load %arg2[%7, %c0_2] : memref<2x1xf32, #tpu.memory_space<smem>>
    memref.store %cst_1, %arg2[%7, %c0_2] : memref<2x1xf32, #tpu.memory_space<smem>>
    %c2_i32 = arith.constant 2 : i32
    return
  }
}

</mosaic_0001>

<llo_original>
// kernel: tpu_custom_call.1
$region0: #{tpu_custom_call.1}
  #allocation0 [shape = 'u32[]', space=smem, size = 0x4, offset = 0x4, fixed_abs, tag = 'smem constant byte address 0x4 - core index']
  #allocation1 [shape = 'u32[72,128]{1,0:T(1,128)}', space=vmem, size = 0x9000, scoped, tag = 'internal scratch']
  #allocation2 [shape = 's32[1]{0:T(128)S(6)}', space=smem, size = 0x200, scoped, tag = 'scoped memory for tpu_custom_call.1']
  %s0 = inlined_call_operand.<no memory space> [shape: s32[1], index: 0, kind: input, shape index: {}]
  %s1 = inlined_call_operand.hbm [shape: s32[2], index: 1, kind: output, shape index: {0}]
  %s2 = inlined_call_operand.vmem [shape: f32[2,1], index: 2, kind: output, shape index: {1}]
  %3 = xla_tuple %s1, %s2
  %s4 = sld [smem:[#allocation0]]
  $region22: #{tpu_custom_call.1} parent=0
    _
  %s6 = ssub.s32 1, %s4
  %s7 = scalar_select 0, %s6, %s4
  %8 = sst [smem:[#allocation2]] %s0
  $region1: #{tpu_custom_call.1} parent=0
    #allocation3 [shape = 'u8[512]{0}', space=smem, size = 0x200, scoped, tag = 'output window, operand 0, single buffered']
    #allocation4 [shape = 's32[1]{0}', space=sflag, size = 0x4, scoped, tag = 'scoped memory for tpu_custom_call.1']
    #allocation5 [shape = 's32[1]{0}', space=sflag, size = 0x4, scoped, tag = 'scoped memory for tpu_custom_call.1']
    #allocation6 [shape = 'u8[1024]{0}', space=smem, size = 0x400, scoped, tag = 'output window, operand 1, single buffered']
    %9 = vsyncpa [#allocation4], 0
    %10 = vsyncpa [#allocation5], 0
    // Predicated region
    $region2: #{tpu_custom_call.1} parent=1 // pred_check
      _
    $region3: #{tpu_custom_call.1} parent=1 // pred_check_branch
      %12 = sbr.rel (0) target = $region5
    $region4: #{tpu_custom_call.1} parent=1 // pred_region
      _
    $region5: #{tpu_custom_call.1} parent=1 // pred_fallthru
      _
    %s13 = sld [smem:[#allocation2]]
    %s14 = scalar_lea.smem [#allocation3], 0
    %15 = sst [smem:[%s14]] %s13
    %s16 = scalar_lea.smem [#allocation6], 0
    %17 = sst [smem:[%s16]] 0.0
    %s18 = scalar_lea.smem [#allocation3], 1
    %19 = sst [smem:[%s18]] %s13
    %s20 = scalar_lea.smem [#allocation6], 128
    %21 = sst [smem:[%s20]] 0.0
    // Predicated region
    $region6: #{tpu_custom_call.1} parent=1 // pred_check
      _
    $region7: #{tpu_custom_call.1} parent=1 // pred_check_branch
      %23 = sbr.rel (0) target = $region9
    $region8: #{tpu_custom_call.1} parent=1 // pred_region
      %25 = vsyncadd [#allocation4], 0
      %s27 = sshll.u32 %s1, 4
      %s28 = int_to_ptr.hbm [resolvable:$true] %s27
      %30 = dma.smem_to_hbm [#allocation3], 16, %s28, [#allocation4]
    $region9: #{tpu_custom_call.1} parent=1 // pred_fallthru
      _
    // Predicated region
    $region10: #{tpu_custom_call.1} parent=1 // pred_check
      _
    $region11: #{tpu_custom_call.1} parent=1 // pred_check_branch
      %32 = sbr.rel (0) target = $region13
    $region12: #{tpu_custom_call.1} parent=1 // pred_region
      %34 = vsyncadd [#allocation5], 0
      %s36 = sshll.u32 %s2, 4
      %s37 = int_to_ptr.vmem [resolvable:$true] %s36
      %39 = dma.smem_to_vmem [#allocation6], 32, %s37, [#allocation5]
    $region13: #{tpu_custom_call.1} parent=1 // pred_fallthru
      _
    // Predicated region
    $region14: #{tpu_custom_call.1} parent=1 // pred_check
      _
    $region15: #{tpu_custom_call.1} parent=1 // pred_check_branch
      %41 = sbr.rel (0) target = $region17
    $region16: #{tpu_custom_call.1} parent=1 // pred_region
      %43 = dma.done [#allocation4], 16
    $region17: #{tpu_custom_call.1} parent=1 // pred_fallthru
      _
    // Predicated region
    $region18: #{tpu_custom_call.1} parent=1 // pred_check
      _
    $region19: #{tpu_custom_call.1} parent=1 // pred_check_branch
      %45 = sbr.rel (0) target = $region21
    $region20: #{tpu_custom_call.1} parent=1 // pred_region
      %47 = dma.done [#allocation5], 32
    $region21: #{tpu_custom_call.1} parent=1 // pred_fallthru
      _
    %48 = sfence
    %49 = vsyncpa [#allocation4], 1
    %50 = vsyncpa [#allocation5], 1

</llo_original>
